<compile_context>
chip_gen: v7x
topology: tpu7x:2x2x1
jax: 0.10.0
libtpu: 0.0.40
codegen_flags: <defaults>
</compile_context>

<pallas_src>
import numpy as np
import jax
import jax.numpy as jnp
from jax import lax
from jax.experimental import pallas as pl
from jax.experimental.pallas import tpu as pltpu


def _linear_conv_kernel(x_ref, w_ref, b_ref, o_ref):
    # x_ref: (blk, HW) f32     w_ref: (HW, 128) f32 (cols 0,1 real, rest 0)
    # b_ref: (1, 128) f32      o_ref: (blk, 2) f32
    y = jnp.dot(x_ref[...], w_ref[...], preferred_element_type=jnp.float32)
    # Slice to the 2 real columns first, then add bias (one vreg-wide VPU add).
    o_ref[...] = y[:, :2] + b_ref[:, :2]


def _round_up(a, b):
    return (a + b - 1) // b * b


def linear_conv_net(x_nchw, w1, b1, w2):
    """x_nchw: (N,1,H,W); w1: (5,1,3,3); b1: (5,); w2: (3,1,2,2) -> (N,2) f32."""
    N, _, H, W = x_nchw.shape
    HW = H * W

    # ---- fold the linear op into a per-pixel weight map (trace-time, tiny) ----
    def coverage_map(wsum, kh, kw):
        ho, wo = H - kh + 1, W - kw + 1
        m = jnp.zeros((H, W), jnp.float32)
        for ki in range(kh):
            for kj in range(kw):
                m = m.at[ki:ki + ho, kj:kj + wo].add(wsum[ki, kj])
        return m.reshape(HW)

    w1sum = jnp.sum(w1[:, 0].astype(jnp.float32), axis=0)        # (3,3)
    w2sum = jnp.sum(w2[:, 0].astype(jnp.float32), axis=0)        # (2,2)
    wmap = jnp.zeros((HW, 128), jnp.float32)
    wmap = wmap.at[:, 0].set(coverage_map(w1sum, 3, 3))
    wmap = wmap.at[:, 1].set(coverage_map(w2sum, 2, 2))
    bias = jnp.zeros((1, 128), jnp.float32)
    bias = bias.at[0, 0].set(
        jnp.sum(b1.astype(jnp.float32)) * float((H - 2) * (W - 2)))

    # ---- lane-dense (N, H*W) input (free reshape for C_in == 1) ----
    x_flat = x_nchw[:, 0, :, :].astype(jnp.float32).reshape(N, HW)

    # Adaptive batch tile: target ~2 MiB of input per pipeline buffer
    # (measured HBM-roofline sweet spot), multiple of 8 sublanes, capped at
    # 2048 rows and never larger than the (8-aligned) batch itself.
    target_rows = max(8, ((2 << 20) // (HW * 4)) // 8 * 8)
    blk = int(min(2048, target_rows, _round_up(N, 8)))
    n_pad = _round_up(N, blk)
    if n_pad != N:
        x_flat = jnp.pad(x_flat, ((0, n_pad - N), (0, 0)))

    out = pl.pallas_call(
        _linear_conv_kernel,
        out_shape=jax.ShapeDtypeStruct((n_pad, 2), jnp.float32),
        grid=(n_pad // blk,),
        in_specs=[
            pl.BlockSpec((blk, HW), lambda i: (i, 0)),     # x tile (pipelined)
            pl.BlockSpec((HW, 128), lambda i: (0, 0)),     # wmap (resident)
            pl.BlockSpec((1, 128), lambda i: (0, 0)),      # bias (resident)
        ],
        out_specs=pl.BlockSpec((blk, 2), lambda i: (i, 0)),
        compiler_params=pltpu.CompilerParams(
            dimension_semantics=("parallel",)),
    )(x_flat, wmap, bias)
    return out[:N]


def _reference(x_nchw, w1, b1, w2):
    """Pure-JAX reference matching torch semantics (NCHW, VALID, stride 1)."""
    dn = ("NCHW", "OIHW", "NCHW")
    c1 = lax.conv_general_dilated(x_nchw, w1, (1, 1), "VALID",
                                  dimension_numbers=dn) + b1[None, :, None, None]
    c2 = lax.conv_general_dilated(x_nchw, w2, (1, 1), "VALID",
                                  dimension_numbers=dn)
    return jnp.stack([c1.sum(axis=(1, 2, 3)), c2.sum(axis=(1, 2, 3))], axis=1)


if __name__ == "__main__":
    key = jax.random.PRNGKey(0)
    k_x, k_w1, k_b1, k_w2 = jax.random.split(key, 4)

    # small shapes consistent with the module: N=2, C_in=1, H=W=16
    x = jax.random.normal(k_x, (2, 1, 16, 16), dtype=jnp.float32)

    # deterministic synthetic parameters
    w1 = jax.random.normal(k_w1, (5, 1, 3, 3), dtype=jnp.float32) * 0.1
    b1 = jax.random.normal(k_b1, (5,), dtype=jnp.float32) * 0.1
    w2 = jax.random.normal(k_w2, (3, 1, 2, 2), dtype=jnp.float32) * 0.1

    out = jax.block_until_ready(linear_conv_net(x, w1, b1, w2))
    ref = jax.block_until_ready(_reference(x, w1, b1, w2))

    assert out.shape == (2, 2) and out.dtype == jnp.float32
    np.testing.assert_allclose(np.asarray(out), np.asarray(ref), rtol=1e-4, atol=1e-4)
    print("KERNEL_OK")
</pallas_src>

<mosaic_0001>
module attributes {stable_mosaic.version = 11 : i64} {
  func.func @_linear_conv_kernel(%arg0: i32, %arg1: memref<8x256xf32, #tpu.memory_space<vmem>>, %arg2: memref<256x128xf32, #tpu.memory_space<vmem>>, %arg3: memref<1x128xf32, #tpu.memory_space<vmem>>, %arg4: memref<8x2xf32, #tpu.memory_space<vmem>>) attributes {dimension_semantics = [#tpu.dimension_semantics<parallel>], iteration_bounds = array<i64: 1>, scalar_prefetch = 0 : i64, scratch_operands = 0 : i64, tpu.core_type = #tpu.core_type<tc>, window_params = [{transform_indices = @transform_0, window_bounds = array<i64: 8, 256>}, {pipeline_mode = #tpu.pipeline_mode<synchronous>, transform_indices = @transform_1, window_bounds = array<i64: 256, 128>}, {pipeline_mode = #tpu.pipeline_mode<synchronous>, transform_indices = @transform_2, window_bounds = array<i64: 1, 128>}, {transform_indices = @transform_3, window_bounds = array<i64: 8, 2>}]} {
    %c0 = arith.constant 0 : index
    %c0_0 = arith.constant 0 : index
    %0 = vector.load %arg1[%c0, %c0_0] : memref<8x256xf32, #tpu.memory_space<vmem>>, vector<8x256xf32>
    %c0_1 = arith.constant 0 : index
    %c0_2 = arith.constant 0 : index
    %1 = vector.load %arg2[%c0_1, %c0_2] : memref<256x128xf32, #tpu.memory_space<vmem>>, vector<256x128xf32>
    %cst = arith.constant dense<0.000000e+00> : vector<8x128xf32>
    %2 = tpu.matmul %0, %1, %cst {dimension_numbers = #tpu.dot_dimension_numbers<[1], [0], [0], [1], [0, 0, 1, 1], [], []>} : vector<8x256xf32>, vector<256x128xf32>, vector<8x128xf32> -> vector<8x128xf32>
    %3 = vector.extract_strided_slice %2 {offsets = [0, 0], sizes = [8, 2], strides = [1, 1]} : vector<8x128xf32> to vector<8x2xf32>
    %c0_3 = arith.constant 0 : index
    %c0_4 = arith.constant 0 : index
    %4 = vector.load %arg3[%c0_3, %c0_4] : memref<1x128xf32, #tpu.memory_space<vmem>>, vector<1x2xf32>
    %5 = vector.broadcast %4 : vector<1x2xf32> to vector<8x2xf32>
    %6 = arith.addf %3, %5 : vector<8x2xf32>
    %c0_5 = arith.constant 0 : index
    %c0_6 = arith.constant 0 : index
    %7 = vector.load %arg4[%c0_5, %c0_6] : memref<8x2xf32, #tpu.memory_space<vmem>>, vector<8x2xf32>
    tpu.vector_store %arg4[%c0_5, %c0_6], %6 {strides = array<i32>} : memref<8x2xf32, #tpu.memory_space<vmem>>, vector<8x2xf32>,
    return
  }
  func.func @transform_0(%arg0: i32) -> (i32, i32) {
    %c0_i32 = arith.constant 0 : i32
    %c0_i32_0 = arith.constant 0 : i32
    return %arg0, %c0_i32 : i32, i32
  }
  func.func @transform_1(%arg0: i32) -> (i32, i32) {
    %c0_i32 = arith.constant 0 : i32
    %c0_i32_0 = arith.constant 0 : i32
    %c0_i32_1 = arith.constant 0 : i32
    return %c0_i32, %c0_i32_0 : i32, i32
  }
  func.func @transform_2(%arg0: i32) -> (i32, i32) {
    %c0_i32 = arith.constant 0 : i32
    %c0_i32_0 = arith.constant 0 : i32
    %c0_i32_1 = arith.constant 0 : i32
    return %c0_i32, %c0_i32_0 : i32, i32
  }
  func.func @transform_3(%arg0: i32) -> (i32, i32) {
    %c0_i32 = arith.constant 0 : i32
    %c0_i32_0 = arith.constant 0 : i32
    return %arg0, %c0_i32 : i32, i32
  }
}

</mosaic_0001>

<llo_original>
// kernel: tpu_custom_call.1
$region0: #{tpu_custom_call.1}
  #allocation0 [shape = 'u32[]', space=smem, size = 0x4, offset = 0x4, fixed_abs, tag = 'smem constant byte address 0x4 - core index']
  #allocation1 [shape = 'u32[144,128]{1,0:T(1,128)}', space=vmem, size = 0x12000, scoped, tag = 'internal scratch']
  %s0 = inlined_call_operand.hbm [shape: f32[8,256], index: 0, kind: input, shape index: {}]
  %s1 = inlined_call_operand.hbm [shape: f32[256,128], index: 1, kind: input, shape index: {}]
  %s2 = inlined_call_operand.vmem [shape: f32[1,128], index: 2, kind: input, shape index: {}]
  %s3 = inlined_call_operand.vmem [shape: f32[8,2], index: 3, kind: output, shape index: {}]
  %s4 = sld [smem:[#allocation0]]
  $region30: #{tpu_custom_call.1} parent=0
    _
  %s6 = ssub.s32 1, %s4
  %s7 = scalar_select 0, %s6, %s4
  $region1: #{tpu_custom_call.1} parent=0
    #allocation2 [shape = 'u8[8192]{0}', space=vmem, size = 0x2000, scoped, tag = 'input window, operand 0, single buffered']
    #allocation3 [shape = 's32[1]{0}', space=sflag, size = 0x4, scoped, tag = 'scoped memory for tpu_custom_call.1']
    #allocation4 [shape = 'u8[131072]{0}', space=vmem, size = 0x20000, scoped, tag = 'input window, operand 1, single buffered']
    #allocation5 [shape = 's32[1]{0}', space=sflag, size = 0x4, scoped, tag = 'scoped memory for tpu_custom_call.1']
    %8 = vsyncpa [#allocation3], 0
    %9 = vsyncpa [#allocation5], 0
    // Predicated region
    $region2: #{tpu_custom_call.1} parent=1 // pred_check
      _
    $region3: #{tpu_custom_call.1} parent=1 // pred_check_branch
      %11 = sbr.rel (0) target = $region5
    $region4: #{tpu_custom_call.1} parent=1 // pred_region
      %s13 = ssub.s32 256, 256
      %14 = vsyncadd [#allocation3], %s13
      %s16 = sshll.u32 [#allocation2], 4
      %s17 = int_to_ptr.vmem [resolvable:$true] %s16
      %19 = dma.hbm_to_vmem [thread:$0]  %s0, 256, %s17, [#allocation3]
    $region5: #{tpu_custom_call.1} parent=1 // pred_fallthru
      _
    // Predicated region
    $region6: #{tpu_custom_call.1} parent=1 // pred_check
      _
    $region7: #{tpu_custom_call.1} parent=1 // pred_check_branch
      %21 = sbr.rel (0) target = $region9
    $region8: #{tpu_custom_call.1} parent=1 // pred_region
      %s23 = ssub.s32 4096, 4096
      %24 = vsyncadd [#allocation5], %s23
      %s25 = sshll.u32 [#allocation4], 4
      %s26 = int_to_ptr.vmem [resolvable:$true] %s25
      %31 = dma.hbm_to_vmem [thread:$0]  %s1, 4096, %s26, [#allocation5], 128, 128, 8
    $region9: #{tpu_custom_call.1} parent=1 // pred_fallthru
      _
    // Predicated region
    $region10: #{tpu_custom_call.1} parent=1 // pred_check
      _
    $region11: #{tpu_custom_call.1} parent=1 // pred_check_branch
      %33 = sbr.rel (0) target = $region13
    $region12: #{tpu_custom_call.1} parent=1 // pred_region
      _
    $region13: #{tpu_custom_call.1} parent=1 // pred_fallthru
      _
    // Predicated region
    $region14: #{tpu_custom_call.1} parent=1 // pred_check
      _
    $region15: #{tpu_custom_call.1} parent=1 // pred_check_branch
      %35 = sbr.rel (0) target = $region17
    $region16: #{tpu_custom_call.1} parent=1 // pred_region
      %36 = dma.done [#allocation3], 256
    $region17: #{tpu_custom_call.1} parent=1 // pred_fallthru
      _
    // Predicated region
    $region18: #{tpu_custom_call.1} parent=1 // pred_check
      _
    $region19: #{tpu_custom_call.1} parent=1 // pred_check_branch
      %38 = sbr.rel (0) target = $region21
    $region20: #{tpu_custom_call.1} parent=1 // pred_region
      %39 = dma.done [#allocation5], 4096
    $region21: #{tpu_custom_call.1} parent=1 // pred_fallthru
      _
    %v40 = vld [vmem:[#allocation2] sm:$0xff]
    %v41 = vld [vmem:[#allocation2 + $0x8] sm:$0xff]
    %v42 = vld [vmem:[#allocation4] sm:$0xff]
    %v43 = vld [vmem:[#allocation4 + $0x8] sm:$0xff]
    %v44 = vld [vmem:[#allocation4 + $0x10] sm:$0xff]
    %v45 = vld [vmem:[#allocation4 + $0x18] sm:$0xff]
    %v46 = vld [vmem:[#allocation4 + $0x20] sm:$0xff]
    %v47 = vld [vmem:[#allocation4 + $0x28] sm:$0xff]
    %v48 = vld [vmem:[#allocation4 + $0x30] sm:$0xff]
    %v49 = vld [vmem:[#allocation4 + $0x38] sm:$0xff]
    %v50 = vld [vmem:[#allocation4 + $0x40] sm:$0xff]
    %v51 = vld [vmem:[#allocation4 + $0x48] sm:$0xff]
    %v52 = vld [vmem:[#allocation4 + $0x50] sm:$0xff]
    %v53 = vld [vmem:[#allocation4 + $0x58] sm:$0xff]
    %v54 = vld [vmem:[#allocation4 + $0x60] sm:$0xff]
    %v55 = vld [vmem:[#allocation4 + $0x68] sm:$0xff]
    %v56 = vld [vmem:[#allocation4 + $0x70] sm:$0xff]
    %v57 = vld [vmem:[#allocation4 + $0x78] sm:$0xff]
    %v58 = vld [vmem:[#allocation4 + $0x80] sm:$0xff]
    %v59 = vld [vmem:[#allocation4 + $0x88] sm:$0xff]
    %v60 = vld [vmem:[#allocation4 + $0x90] sm:$0xff]
    %v61 = vld [vmem:[#allocation4 + $0x98] sm:$0xff]
    %v62 = vld [vmem:[#allocation4 + $0xa0] sm:$0xff]
    %v63 = vld [vmem:[#allocation4 + $0xa8] sm:$0xff]
    %v64 = vld [vmem:[#allocation4 + $0xb0] sm:$0xff]
    %v65 = vld [vmem:[#allocation4 + $0xb8] sm:$0xff]
    %v66 = vld [vmem:[#allocation4 + $0xc0] sm:$0xff]
    %v67 = vld [vmem:[#allocation4 + $0xc8] sm:$0xff]
    %v68 = vld [vmem:[#allocation4 + $0xd0] sm:$0xff]
    %v69 = vld [vmem:[#allocation4 + $0xd8] sm:$0xff]
    %v70 = vld [vmem:[#allocation4 + $0xe0] sm:$0xff]
    %v71 = vld [vmem:[#allocation4 + $0xe8] sm:$0xff]
    %v72 = vld [vmem:[#allocation4 + $0xf0] sm:$0xff]
    %v73 = vld [vmem:[#allocation4 + $0xf8] sm:$0xff]
    %74 = vmatprep.subr.mxu0 0.0
    %75 = vmatpush1.msra.mxu0 %v42
    %76 = vmatprep.subr.mxu0 0.0
    %77 = vmatpush1.msra.mxu0 %v43
    %78 = vmatprep.subr.mxu0 0.0
    %79 = vmatpush1.msra.mxu0 %v44
    %80 = vmatprep.subr.mxu0 0.0
    %81 = vmatpush1.msra.mxu0 %v45
    %82 = vmatprep.subr.mxu0 0.0
    %83 = vmatpush1.msra.mxu0 %v46
    %84 = vmatprep.subr.mxu0 0.0
    %85 = vmatpush1.msra.mxu0 %v47
    %86 = vmatprep.subr.mxu0 0.0
    %87 = vmatpush1.msra.mxu0 %v48
    %88 = vmatprep.subr.mxu0 0.0
    %89 = vmatpush1.msra.mxu0 %v49
    %90 = vmatprep.subr.mxu0 0.0
    %91 = vmatpush1.msra.mxu0 %v50
    %92 = vmatprep.subr.mxu0 0.0
    %93 = vmatpush1.msra.mxu0 %v51
    %94 = vmatprep.subr.mxu0 0.0
    %95 = vmatpush1.msra.mxu0 %v52
    %96 = vmatprep.subr.mxu0 0.0
    %97 = vmatpush1.msra.mxu0 %v53
    %98 = vmatprep.subr.mxu0 0.0
    %99 = vmatpush1.msra.mxu0 %v54
    %100 = vmatprep.subr.mxu0 0.0
    %101 = vmatpush1.msra.mxu0 %v55
    %102 = vmatprep.subr.mxu0 0.0
    %103 = vmatpush1.msra.mxu0 %v56
    %104 = vmatprep.subr.mxu0 0.0
    %105 = vmatpush1.msra.mxu0 %v57
    %106 = vmatprep.subr.mxu0 0.0
    %107 = vmatpush1.msra.mxu0 %v58
    %108 = vmatprep.subr.mxu0 0.0
    %109 = vmatpush1.msra.mxu0 %v59
    %110 = vmatprep.subr.mxu0 0.0
    %111 = vmatpush1.msra.mxu0 %v60
    %112 = vmatprep.subr.mxu0 0.0
    %113 = vmatpush1.msra.mxu0 %v61
    %114 = vmatprep.subr.mxu0 0.0
    %115 = vmatpush1.msra.mxu0 %v62
    %116 = vmatprep.subr.mxu0 0.0
    %117 = vmatpush1.msra.mxu0 %v63
    %118 = vmatprep.subr.mxu0 0.0
    %119 = vmatpush1.msra.mxu0 %v64
    %120 = vmatprep.subr.mxu0 0.0
    %121 = vmatpush1.msra.mxu0 %v65
    %122 = vmatprep.subr.mxu0 0.0
    %123 = vmatpush1.msra.mxu0 %v66
    %124 = vmatprep.subr.mxu0 0.0
    %125 = vmatpush1.msra.mxu0 %v67
    %126 = vmatprep.subr.mxu0 0.0
    %127 = vmatpush1.msra.mxu0 %v68
    %128 = vmatprep.subr.mxu0 0.0
    %129 = vmatpush1.msra.mxu0 %v69
    %130 = vmatprep.subr.mxu0 0.0
    %131 = vmatpush1.msra.mxu0 %v70
    %132 = vmatprep.subr.mxu0 0.0
    %133 = vmatpush1.msra.mxu0 %v71
    %134 = vmatprep.subr.mxu0 0.0
    %135 = vmatpush1.msra.mxu0 %v72
    %136 = vmatprep.subr.mxu0 0.0
    %137 = vmatpush1.msra.mxu0 %v73
    %138 = vmatprep.mubr.f32.mxu0 %v41
    %139 = vmatmul.mubr.f32.gmra.mrb[0].mxu0 %v40
    %v140 = vpop.f32.mrb[0].mxu0
    %v141 = vadd.f32 0.0, %v140
    %v142 = vpop.f32.mrb[0].mxu0
    %143 = vdwg.mxu0
    %v144 = vld [vmem:[%s2] sm:$0x1]
    %v146 = vlaneseq
    %v147 = vshrl.u32 %v146, 7
    %v148 = vsub.s32 0, %v147
    %v149 = vrot.slane %v144, %v148
    %v151 = vadd.f32 %v141, %v149
    %vm152 = vcmask 15360
    %153 = vst.msk [vmem:[%s3] sm:$0xff] %vm152, %v151
    // Predicated region
    $region22: #{tpu_custom_call.1} parent=1 // pred_check
      _
    $region23: #{tpu_custom_call.1} parent=1 // pred_check_branch
      %155 = sbr.rel (0) target = $region25
    $region24: #{tpu_custom_call.1} parent=1 // pred_region
      _
    $region25: #{tpu_custom_call.1} parent=1 // pred_fallthru
      _
    // Predicated region
    $region26: #{tpu_custom_call.1} parent=1 // pred_check
      _
    $region27: #{tpu_custom_call.1} parent=1 // pred_check_branch
      %157 = sbr.rel (0) target = $region29
    $region28: #{tpu_custom_call.1} parent=1 // pred_region
      _
    $region29: #{tpu_custom_call.1} parent=1 // pred_fallthru
      _
    %158 = vsyncpa [#allocation3], 1
    %159 = vsyncpa [#allocation5], 1

</llo_original>
